<compile_context>
chip_gen: v6e
topology: v6e:2x2x1
jax: 0.10.0
libtpu: 0.0.40
codegen_flags: <defaults>
</compile_context>

<pallas_src>
import functools

import jax
import jax.numpy as jnp
from jax.experimental import pallas as pl
from jax.experimental.pallas import tpu as pltpu


def _vmem_capacity_bytes():
    """Best-effort query of per-core VMEM; conservative fallback (v7x)."""
    try:
        info = pltpu.get_tpu_info()
        cap = getattr(info, "vmem_capacity_bytes", None)
        if cap:
            return int(cap)
    except Exception:
        pass
    return 64 * 1024 * 1024


def _choose_tiles(B, C, L, itemsize, sublane, target_bytes):
    """Pick (batch_tile, channel_tile) targeting ~target_bytes per block."""
    per_sample = C * L * itemsize
    if per_sample >= target_bytes:
        # One sample per block; tile the channel axis (the roll axis L is
        # never tiled, so channel tiles are independent -- no halo).
        rows = (target_bytes // max(1, L * itemsize)) // sublane * sublane
        rows = max(sublane, rows)
        return 1, (C if rows >= C else int(rows))
    # Small samples: fold several whole samples per block so DMAs stay large.
    bt = max(1, min(B, 32, target_bytes // max(1, per_sample)))
    while B % bt:
        bt -= 1
    return int(bt), C


def _phase_shuffle_kernel(shift_ref, x_ref, o_ref, *, shift_factor, batch_tile,
                          batch_grid_axis, use_xlu_roll):
    """One grid step handles one (batch_tile, channel_tile, L) block.

    shift_ref: SMEM int32[B]               (scalar-prefetched |shift| per sample)
    x_ref:     VMEM (batch_tile, TC, L)    input block
    o_ref:     VMEM (batch_tile, TC, L)    output block
    """
    b0 = pl.program_id(batch_grid_axis) * batch_tile

    def _rolled(i, k):
        x = x_ref[i]                       # (TC, L); load only inside the branch
        if k == 0:
            return x
        if use_xlu_roll:
            # XLU lane rotation, same convention as jnp.roll:
            #   out[:, j] = x[:, (j - k) mod L]
            return pltpu.roll(x, k, 1)
        # Fallback for L that is not a multiple of 128 lanes.
        return jnp.concatenate([x[:, -k:], x[:, :-k]], axis=-1)

    for i in range(batch_tile):
        s = shift_ref[b0 + i]
        # s is clipped to [0, shift_factor] in the wrapper, so exactly one of
        # the following branches fires per sub-sample (single load + store).
        for k in range(shift_factor + 1):

            @pl.when(s == k)
            def _(i=i, k=k):
                o_ref[i] = _rolled(i, k)


def phase_shuffle_apply(x, abs_shift, *, shift_factor=2, block=None,
                        donate_x=False):
    """Apply the per-sample right circular roll given precomputed |shift|.

    block: optional (batch_tile, channel_tile) override; auto-chosen otherwise.
    """
    B, C, L = x.shape
    itemsize = jnp.dtype(x.dtype).itemsize
    sublane = max(8, 32 // max(1, itemsize))      # 8 / 16 / 32 for f32 / bf16 / i8

    # Guard: guarantee exactly one pl.when branch fires per sub-sample.
    abs_shift = jnp.clip(abs_shift.astype(jnp.int32), 0, shift_factor)

    vmem_cap = _vmem_capacity_bytes()
    target = min(8 * 1024 * 1024, vmem_cap // 8)  # 4 resident blocks <= VMEM/2

    if block is None:
        bt, tc = _choose_tiles(B, C, L, itemsize, sublane, target)
    else:
        bt, tc = block
        assert B % bt == 0, "batch tile must divide B"
        assert tc == C or tc % sublane == 0, (
            f"channel tile must be full C or a multiple of {sublane} "
            f"sublanes for dtype {x.dtype}")

    nb = B // bt
    nc = pl.cdiv(C, tc)
    use_xlu_roll = (L % 128 == 0)

    # Put the larger grid axis first so both v7x TensorCores get work.
    if nc > nb:
        grid = (nc, nb)
        batch_axis = 1
        idx = lambda c, b, shifts: (b, c, 0)
    else:
        grid = (nb, nc)
        batch_axis = 0
        idx = lambda b, c, shifts: (b, c, 0)

    kernel = functools.partial(
        _phase_shuffle_kernel, shift_factor=shift_factor, batch_tile=bt,
        batch_grid_axis=batch_axis, use_xlu_roll=use_xlu_roll)

    block_bytes = bt * min(tc, C) * L * itemsize
    vmem_limit = int(min(max(32 << 20, 4 * block_bytes + (4 << 20)),
                         max(32 << 20, vmem_cap - (16 << 20))))

    return pl.pallas_call(
        kernel,
        out_shape=jax.ShapeDtypeStruct(x.shape, x.dtype),
        grid_spec=pltpu.PrefetchScalarGridSpec(
            num_scalar_prefetch=1,                         # abs_shift -> SMEM
            grid=grid,
            in_specs=[pl.BlockSpec((bt, tc, L), idx)],
            out_specs=pl.BlockSpec((bt, tc, L), idx),
        ),
        input_output_aliases=({1: 0} if donate_x else {}),
        compiler_params=pltpu.CompilerParams(
            dimension_semantics=("parallel", "parallel"),
            vmem_limit_bytes=vmem_limit,
        ),
    )(abs_shift, x)


def phase_shuffle(x, key, shift_factor=2):
    """Pallas implementation of PhaseShuffle.forward.

    Returns (shuffled_x, abs_shift) so the caller can verify against a
    reference using the exact same random shifts.  Note: like the PyTorch
    module, only |shift| is ever applied (its negative branch is dead code).
    """
    random_shift = jax.random.randint(
        key, (x.shape[0],), minval=-shift_factor, maxval=shift_factor + 1)
    abs_shift = jnp.abs(random_shift).astype(jnp.int32)
    out = phase_shuffle_apply(x, abs_shift, shift_factor=shift_factor)
    return out, abs_shift


def _reference(x, abs_shift):
    # Pure-JAX reference: right circular roll of the last axis by abs_shift[b].
    return jnp.stack(
        [jnp.roll(x[i], int(abs_shift[i]), axis=-1) for i in range(x.shape[0])],
        axis=0)


if __name__ == "__main__":
    key = jax.random.PRNGKey(0)
    k_x, k_shift, k_x2, k_x3, k_x4 = jax.random.split(key, 5)

    # 1) Batch-folded auto path (small samples -> whole batch in one block),
    #    lane-aligned L so the XLU roll path is exercised.
    B, C, L = 4, 8, 128
    x = jax.random.normal(k_x, (B, C, L), dtype=jnp.float32)
    out, abs_shift = phase_shuffle(x, k_shift, shift_factor=2)
    out = jax.block_until_ready(out)
    ref = _reference(x, jax.device_get(abs_shift))
    assert out.shape == x.shape and out.dtype == x.dtype
    assert jnp.allclose(out, ref), "PhaseShuffle mismatch (batch-folded path)"

    # 2) Channel-tiled path with forced shifts covering every branch (0, 1, 2):
    #    C=16 tiled into two (1, 8, 128) blocks per sample.
    x_t = jax.random.normal(k_x2, (3, 16, 128), dtype=jnp.float32)
    forced = jnp.array([0, 1, 2], dtype=jnp.int32)
    out_t = jax.block_until_ready(
        phase_shuffle_apply(x_t, forced, shift_factor=2, block=(1, 8)))
    ref_t = _reference(x_t, jax.device_get(forced))
    assert jnp.allclose(out_t, ref_t), "PhaseShuffle mismatch (channel-tiled)"

    # 3) Swapped-grid path (more channel tiles than batch blocks -> channel
    #    axis leads the grid for 2-core sharding on v7x).
    x_s = jax.random.normal(k_x3, (1, 32, 128), dtype=jnp.float32)
    forced_s = jnp.array([2], dtype=jnp.int32)
    out_s = jax.block_until_ready(
        phase_shuffle_apply(x_s, forced_s, shift_factor=2, block=(1, 8)))
    ref_s = _reference(x_s, jax.device_get(forced_s))
    assert jnp.allclose(out_s, ref_s), "PhaseShuffle mismatch (swapped grid)"

    # 4) Toy shape with full-dim (non-128) lane block -> concatenate fallback.
    x2 = jax.random.normal(k_x4, (2, 4, 16), dtype=jnp.float32)
    out2, abs_shift2 = phase_shuffle(x2, k_shift, shift_factor=2)
    out2 = jax.block_until_ready(out2)
    ref2 = _reference(x2, jax.device_get(abs_shift2))
    assert jnp.allclose(out2, ref2), "PhaseShuffle mismatch (toy shape)"

    print("KERNEL_OK")
</pallas_src>

<mosaic_0001>
module attributes {stable_mosaic.version = 11 : i64} {
  func.func @_phase_shuffle_kernel(%arg0: i32, %arg1: i32, %arg2: memref<4xi32, #tpu.memory_space<smem>>, %arg3: memref<4x8x128xf32, #tpu.memory_space<vmem>>, %arg4: memref<4x8x128xf32, #tpu.memory_space<vmem>>) attributes {dimension_semantics = [#tpu.dimension_semantics<parallel>, #tpu.dimension_semantics<parallel>], iteration_bounds = array<i64: 1, 1>, scalar_prefetch = 1 : i64, scratch_operands = 0 : i64, tpu.core_type = #tpu.core_type<tc>, window_params = [{transform_indices = @transform_0, window_bounds = array<i64: 4, 8, 128>}, {transform_indices = @transform_1, window_bounds = array<i64: 4, 8, 128>}]} {
    %c4_i32 = arith.constant 4 : i32
    %0 = arith.muli %arg0, %c4_i32 : i32
    %c0_i32 = arith.constant 0 : i32
    %1 = arith.addi %0, %c0_i32 : i32
    %2 = arith.index_cast %1 : i32 to index
    %3 = memref.load %arg2[%2] : memref<4xi32, #tpu.memory_space<smem>>
    %c0_i32_0 = arith.constant 0 : i32
    %4 = arith.cmpi eq, %3, %c0_i32_0 : i32
    %5 = arith.extui %4 : i1 to i32
    %c0_i32_1 = arith.constant 0 : i32
    %6 = arith.cmpi ne, %5, %c0_i32_1 : i32
    scf.if %6 {
      %c0 = arith.constant 0 : index
      %c0_24 = arith.constant 0 : index
      %c0_25 = arith.constant 0 : index
      %49 = vector.load %arg3[%c0, %c0_24, %c0_25] : memref<4x8x128xf32, #tpu.memory_space<vmem>>, vector<1x8x128xf32>
      %50 = vector.shape_cast %49 : vector<1x8x128xf32> to vector<8x128xf32>
      %c0_26 = arith.constant 0 : index
      %c0_27 = arith.constant 0 : index
      %c0_28 = arith.constant 0 : index
      %51 = vector.load %arg4[%c0_26, %c0_27, %c0_28] : memref<4x8x128xf32, #tpu.memory_space<vmem>>, vector<1x8x128xf32>
      %52 = vector.shape_cast %51 : vector<1x8x128xf32> to vector<8x128xf32>
      %53 = vector.shape_cast %50 : vector<8x128xf32> to vector<1x8x128xf32>
      tpu.vector_store %arg4[%c0_26, %c0_27, %c0_28], %53 {strides = array<i32>} : memref<4x8x128xf32, #tpu.memory_space<vmem>>, vector<1x8x128xf32>,
    } else {
    }
    %c1_i32 = arith.constant 1 : i32
    %7 = arith.cmpi eq, %3, %c1_i32 : i32
    %8 = arith.extui %7 : i1 to i32
    %c0_i32_2 = arith.constant 0 : i32
    %9 = arith.cmpi ne, %8, %c0_i32_2 : i32
    scf.if %9 {
      %c0 = arith.constant 0 : index
      %c0_24 = arith.constant 0 : index
      %c0_25 = arith.constant 0 : index
      %49 = vector.load %arg3[%c0, %c0_24, %c0_25] : memref<4x8x128xf32, #tpu.memory_space<vmem>>, vector<1x8x128xf32>
      %50 = vector.shape_cast %49 : vector<1x8x128xf32> to vector<8x128xf32>
      %c1_i32_26 = arith.constant 1 : i32
      %51 = tpu.dynamic_rotate %50 by %c1_i32_26 dim 1 : vector<8x128xf32>, i32 -> vector<8x128xf32>
      %c0_27 = arith.constant 0 : index
      %c0_28 = arith.constant 0 : index
      %c0_29 = arith.constant 0 : index
      %52 = vector.load %arg4[%c0_27, %c0_28, %c0_29] : memref<4x8x128xf32, #tpu.memory_space<vmem>>, vector<1x8x128xf32>
      %53 = vector.shape_cast %52 : vector<1x8x128xf32> to vector<8x128xf32>
      %54 = vector.shape_cast %51 : vector<8x128xf32> to vector<1x8x128xf32>
      tpu.vector_store %arg4[%c0_27, %c0_28, %c0_29], %54 {strides = array<i32>} : memref<4x8x128xf32, #tpu.memory_space<vmem>>, vector<1x8x128xf32>,
    } else {
    }
    %c2_i32 = arith.constant 2 : i32
    %10 = arith.cmpi eq, %3, %c2_i32 : i32
    %11 = arith.extui %10 : i1 to i32
    %c0_i32_3 = arith.constant 0 : i32
    %12 = arith.cmpi ne, %11, %c0_i32_3 : i32
    scf.if %12 {
      %c0 = arith.constant 0 : index
      %c0_24 = arith.constant 0 : index
      %c0_25 = arith.constant 0 : index
      %49 = vector.load %arg3[%c0, %c0_24, %c0_25] : memref<4x8x128xf32, #tpu.memory_space<vmem>>, vector<1x8x128xf32>
      %50 = vector.shape_cast %49 : vector<1x8x128xf32> to vector<8x128xf32>
      %c2_i32_26 = arith.constant 2 : i32
      %51 = tpu.dynamic_rotate %50 by %c2_i32_26 dim 1 : vector<8x128xf32>, i32 -> vector<8x128xf32>
      %c0_27 = arith.constant 0 : index
      %c0_28 = arith.constant 0 : index
      %c0_29 = arith.constant 0 : index
      %52 = vector.load %arg4[%c0_27, %c0_28, %c0_29] : memref<4x8x128xf32, #tpu.memory_space<vmem>>, vector<1x8x128xf32>
      %53 = vector.shape_cast %52 : vector<1x8x128xf32> to vector<8x128xf32>
      %54 = vector.shape_cast %51 : vector<8x128xf32> to vector<1x8x128xf32>
      tpu.vector_store %arg4[%c0_27, %c0_28, %c0_29], %54 {strides = array<i32>} : memref<4x8x128xf32, #tpu.memory_space<vmem>>, vector<1x8x128xf32>,
    } else {
    }
    %c1_i32_4 = arith.constant 1 : i32
    %13 = arith.addi %0, %c1_i32_4 : i32
    %14 = arith.index_cast %13 : i32 to index
    %15 = memref.load %arg2[%14] : memref<4xi32, #tpu.memory_space<smem>>
    %c0_i32_5 = arith.constant 0 : i32
    %16 = arith.cmpi eq, %15, %c0_i32_5 : i32
    %17 = arith.extui %16 : i1 to i32
    %c0_i32_6 = arith.constant 0 : i32
    %18 = arith.cmpi ne, %17, %c0_i32_6 : i32
    scf.if %18 {
      %c1 = arith.constant 1 : index
      %c0 = arith.constant 0 : index
      %c0_24 = arith.constant 0 : index
      %49 = vector.load %arg3[%c1, %c0, %c0_24] : memref<4x8x128xf32, #tpu.memory_space<vmem>>, vector<1x8x128xf32>
      %50 = vector.shape_cast %49 : vector<1x8x128xf32> to vector<8x128xf32>
      %c1_25 = arith.constant 1 : index
      %c0_26 = arith.constant 0 : index
      %c0_27 = arith.constant 0 : index
      %51 = vector.load %arg4[%c1_25, %c0_26, %c0_27] : memref<4x8x128xf32, #tpu.memory_space<vmem>>, vector<1x8x128xf32>
      %52 = vector.shape_cast %51 : vector<1x8x128xf32> to vector<8x128xf32>
      %53 = vector.shape_cast %50 : vector<8x128xf32> to vector<1x8x128xf32>
      tpu.vector_store %arg4[%c1_25, %c0_26, %c0_27], %53 {strides = array<i32>} : memref<4x8x128xf32, #tpu.memory_space<vmem>>, vector<1x8x128xf32>,
    } else {
    }
    %c1_i32_7 = arith.constant 1 : i32
    %19 = arith.cmpi eq, %15, %c1_i32_7 : i32
    %20 = arith.extui %19 : i1 to i32
    %c0_i32_8 = arith.constant 0 : i32
    %21 = arith.cmpi ne, %20, %c0_i32_8 : i32
    scf.if %21 {
      %c1 = arith.constant 1 : index
      %c0 = arith.constant 0 : index
      %c0_24 = arith.constant 0 : index
      %49 = vector.load %arg3[%c1, %c0, %c0_24] : memref<4x8x128xf32, #tpu.memory_space<vmem>>, vector<1x8x128xf32>
      %50 = vector.shape_cast %49 : vector<1x8x128xf32> to vector<8x128xf32>
      %c1_i32_25 = arith.constant 1 : i32
      %51 = tpu.dynamic_rotate %50 by %c1_i32_25 dim 1 : vector<8x128xf32>, i32 -> vector<8x128xf32>
      %c1_26 = arith.constant 1 : index
      %c0_27 = arith.constant 0 : index
      %c0_28 = arith.constant 0 : index
      %52 = vector.load %arg4[%c1_26, %c0_27, %c0_28] : memref<4x8x128xf32, #tpu.memory_space<vmem>>, vector<1x8x128xf32>
      %53 = vector.shape_cast %52 : vector<1x8x128xf32> to vector<8x128xf32>
      %54 = vector.shape_cast %51 : vector<8x128xf32> to vector<1x8x128xf32>
      tpu.vector_store %arg4[%c1_26, %c0_27, %c0_28], %54 {strides = array<i32>} : memref<4x8x128xf32, #tpu.memory_space<vmem>>, vector<1x8x128xf32>,
    } else {
    }
    %c2_i32_9 = arith.constant 2 : i32
    %22 = arith.cmpi eq, %15, %c2_i32_9 : i32
    %23 = arith.extui %22 : i1 to i32
    %c0_i32_10 = arith.constant 0 : i32
    %24 = arith.cmpi ne, %23, %c0_i32_10 : i32
    scf.if %24 {
      %c1 = arith.constant 1 : index
      %c0 = arith.constant 0 : index
      %c0_24 = arith.constant 0 : index
      %49 = vector.load %arg3[%c1, %c0, %c0_24] : memref<4x8x128xf32, #tpu.memory_space<vmem>>, vector<1x8x128xf32>
      %50 = vector.shape_cast %49 : vector<1x8x128xf32> to vector<8x128xf32>
      %c2_i32_25 = arith.constant 2 : i32
      %51 = tpu.dynamic_rotate %50 by %c2_i32_25 dim 1 : vector<8x128xf32>, i32 -> vector<8x128xf32>
      %c1_26 = arith.constant 1 : index
      %c0_27 = arith.constant 0 : index
      %c0_28 = arith.constant 0 : index
      %52 = vector.load %arg4[%c1_26, %c0_27, %c0_28] : memref<4x8x128xf32, #tpu.memory_space<vmem>>, vector<1x8x128xf32>
      %53 = vector.shape_cast %52 : vector<1x8x128xf32> to vector<8x128xf32>
      %54 = vector.shape_cast %51 : vector<8x128xf32> to vector<1x8x128xf32>
      tpu.vector_store %arg4[%c1_26, %c0_27, %c0_28], %54 {strides = array<i32>} : memref<4x8x128xf32, #tpu.memory_space<vmem>>, vector<1x8x128xf32>,
    } else {
    }
    %c2_i32_11 = arith.constant 2 : i32
    %25 = arith.addi %0, %c2_i32_11 : i32
    %26 = arith.index_cast %25 : i32 to index
    %27 = memref.load %arg2[%26] : memref<4xi32, #tpu.memory_space<smem>>
    %c0_i32_12 = arith.constant 0 : i32
    %28 = arith.cmpi eq, %27, %c0_i32_12 : i32
    %29 = arith.extui %28 : i1 to i32
    %c0_i32_13 = arith.constant 0 : i32
    %30 = arith.cmpi ne, %29, %c0_i32_13 : i32
    scf.if %30 {
      %c2 = arith.constant 2 : index
      %c0 = arith.constant 0 : index
      %c0_24 = arith.constant 0 : index
      %49 = vector.load %arg3[%c2, %c0, %c0_24] : memref<4x8x128xf32, #tpu.memory_space<vmem>>, vector<1x8x128xf32>
      %50 = vector.shape_cast %49 : vector<1x8x128xf32> to vector<8x128xf32>
      %c2_25 = arith.constant 2 : index
      %c0_26 = arith.constant 0 : index
      %c0_27 = arith.constant 0 : index
      %51 = vector.load %arg4[%c2_25, %c0_26, %c0_27] : memref<4x8x128xf32, #tpu.memory_space<vmem>>, vector<1x8x128xf32>
      %52 = vector.shape_cast %51 : vector<1x8x128xf32> to vector<8x128xf32>
      %53 = vector.shape_cast %50 : vector<8x128xf32> to vector<1x8x128xf32>
      tpu.vector_store %arg4[%c2_25, %c0_26, %c0_27], %53 {strides = array<i32>} : memref<4x8x128xf32, #tpu.memory_space<vmem>>, vector<1x8x128xf32>,
    } else {
    }
    %c1_i32_14 = arith.constant 1 : i32
    %31 = arith.cmpi eq, %27, %c1_i32_14 : i32
    %32 = arith.extui %31 : i1 to i32
    %c0_i32_15 = arith.constant 0 : i32
    %33 = arith.cmpi ne, %32, %c0_i32_15 : i32
    scf.if %33 {
      %c2 = arith.constant 2 : index
      %c0 = arith.constant 0 : index
      %c0_24 = arith.constant 0 : index
      %49 = vector.load %arg3[%c2, %c0, %c0_24] : memref<4x8x128xf32, #tpu.memory_space<vmem>>, vector<1x8x128xf32>
      %50 = vector.shape_cast %49 : vector<1x8x128xf32> to vector<8x128xf32>
      %c1_i32_25 = arith.constant 1 : i32
      %51 = tpu.dynamic_rotate %50 by %c1_i32_25 dim 1 : vector<8x128xf32>, i32 -> vector<8x128xf32>
      %c2_26 = arith.constant 2 : index
      %c0_27 = arith.constant 0 : index
      %c0_28 = arith.constant 0 : index
      %52 = vector.load %arg4[%c2_26, %c0_27, %c0_28] : memref<4x8x128xf32, #tpu.memory_space<vmem>>, vector<1x8x128xf32>
      %53 = vector.shape_cast %52 : vector<1x8x128xf32> to vector<8x128xf32>
      %54 = vector.shape_cast %51 : vector<8x128xf32> to vector<1x8x128xf32>
      tpu.vector_store %arg4[%c2_26, %c0_27, %c0_28], %54 {strides = array<i32>} : memref<4x8x128xf32, #tpu.memory_space<vmem>>, vector<1x8x128xf32>,
    } else {
    }
    %c2_i32_16 = arith.constant 2 : i32
    %34 = arith.cmpi eq, %27, %c2_i32_16 : i32
    %35 = arith.extui %34 : i1 to i32
    %c0_i32_17 = arith.constant 0 : i32
    %36 = arith.cmpi ne, %35, %c0_i32_17 : i32
    scf.if %36 {
      %c2 = arith.constant 2 : index
      %c0 = arith.constant 0 : index
      %c0_24 = arith.constant 0 : index
      %49 = vector.load %arg3[%c2, %c0, %c0_24] : memref<4x8x128xf32, #tpu.memory_space<vmem>>, vector<1x8x128xf32>
      %50 = vector.shape_cast %49 : vector<1x8x128xf32> to vector<8x128xf32>
      %c2_i32_25 = arith.constant 2 : i32
      %51 = tpu.dynamic_rotate %50 by %c2_i32_25 dim 1 : vector<8x128xf32>, i32 -> vector<8x128xf32>
      %c2_26 = arith.constant 2 : index
      %c0_27 = arith.constant 0 : index
      %c0_28 = arith.constant 0 : index
      %52 = vector.load %arg4[%c2_26, %c0_27, %c0_28] : memref<4x8x128xf32, #tpu.memory_space<vmem>>, vector<1x8x128xf32>
      %53 = vector.shape_cast %52 : vector<1x8x128xf32> to vector<8x128xf32>
      %54 = vector.shape_cast %51 : vector<8x128xf32> to vector<1x8x128xf32>
      tpu.vector_store %arg4[%c2_26, %c0_27, %c0_28], %54 {strides = array<i32>} : memref<4x8x128xf32, #tpu.memory_space<vmem>>, vector<1x8x128xf32>,
    } else {
    }
    %c3_i32 = arith.constant 3 : i32
    %37 = arith.addi %0, %c3_i32 : i32
    %38 = arith.index_cast %37 : i32 to index
    %39 = memref.load %arg2[%38] : memref<4xi32, #tpu.memory_space<smem>>
    %c0_i32_18 = arith.constant 0 : i32
    %40 = arith.cmpi eq, %39, %c0_i32_18 : i32
    %41 = arith.extui %40 : i1 to i32
    %c0_i32_19 = arith.constant 0 : i32
    %42 = arith.cmpi ne, %41, %c0_i32_19 : i32
    scf.if %42 {
      %c3 = arith.constant 3 : index
      %c0 = arith.constant 0 : index
      %c0_24 = arith.constant 0 : index
      %49 = vector.load %arg3[%c3, %c0, %c0_24] : memref<4x8x128xf32, #tpu.memory_space<vmem>>, vector<1x8x128xf32>
      %50 = vector.shape_cast %49 : vector<1x8x128xf32> to vector<8x128xf32>
      %c3_25 = arith.constant 3 : index
      %c0_26 = arith.constant 0 : index
      %c0_27 = arith.constant 0 : index
      %51 = vector.load %arg4[%c3_25, %c0_26, %c0_27] : memref<4x8x128xf32, #tpu.memory_space<vmem>>, vector<1x8x128xf32>
      %52 = vector.shape_cast %51 : vector<1x8x128xf32> to vector<8x128xf32>
      %53 = vector.shape_cast %50 : vector<8x128xf32> to vector<1x8x128xf32>
      tpu.vector_store %arg4[%c3_25, %c0_26, %c0_27], %53 {strides = array<i32>} : memref<4x8x128xf32, #tpu.memory_space<vmem>>, vector<1x8x128xf32>,
    } else {
    }
    %c1_i32_20 = arith.constant 1 : i32
    %43 = arith.cmpi eq, %39, %c1_i32_20 : i32
    %44 = arith.extui %43 : i1 to i32
    %c0_i32_21 = arith.constant 0 : i32
    %45 = arith.cmpi ne, %44, %c0_i32_21 : i32
    scf.if %45 {
      %c3 = arith.constant 3 : index
      %c0 = arith.constant 0 : index
      %c0_24 = arith.constant 0 : index
      %49 = vector.load %arg3[%c3, %c0, %c0_24] : memref<4x8x128xf32, #tpu.memory_space<vmem>>, vector<1x8x128xf32>
      %50 = vector.shape_cast %49 : vector<1x8x128xf32> to vector<8x128xf32>
      %c1_i32_25 = arith.constant 1 : i32
      %51 = tpu.dynamic_rotate %50 by %c1_i32_25 dim 1 : vector<8x128xf32>, i32 -> vector<8x128xf32>
      %c3_26 = arith.constant 3 : index
      %c0_27 = arith.constant 0 : index
      %c0_28 = arith.constant 0 : index
      %52 = vector.load %arg4[%c3_26, %c0_27, %c0_28] : memref<4x8x128xf32, #tpu.memory_space<vmem>>, vector<1x8x128xf32>
      %53 = vector.shape_cast %52 : vector<1x8x128xf32> to vector<8x128xf32>
      %54 = vector.shape_cast %51 : vector<8x128xf32> to vector<1x8x128xf32>
      tpu.vector_store %arg4[%c3_26, %c0_27, %c0_28], %54 {strides = array<i32>} : memref<4x8x128xf32, #tpu.memory_space<vmem>>, vector<1x8x128xf32>,
    } else {
    }
    %c2_i32_22 = arith.constant 2 : i32
    %46 = arith.cmpi eq, %39, %c2_i32_22 : i32
    %47 = arith.extui %46 : i1 to i32
    %c0_i32_23 = arith.constant 0 : i32
    %48 = arith.cmpi ne, %47, %c0_i32_23 : i32
    scf.if %48 {
      %c3 = arith.constant 3 : index
      %c0 = arith.constant 0 : index
      %c0_24 = arith.constant 0 : index
      %49 = vector.load %arg3[%c3, %c0, %c0_24] : memref<4x8x128xf32, #tpu.memory_space<vmem>>, vector<1x8x128xf32>
      %50 = vector.shape_cast %49 : vector<1x8x128xf32> to vector<8x128xf32>
      %c2_i32_25 = arith.constant 2 : i32
      %51 = tpu.dynamic_rotate %50 by %c2_i32_25 dim 1 : vector<8x128xf32>, i32 -> vector<8x128xf32>
      %c3_26 = arith.constant 3 : index
      %c0_27 = arith.constant 0 : index
      %c0_28 = arith.constant 0 : index
      %52 = vector.load %arg4[%c3_26, %c0_27, %c0_28] : memref<4x8x128xf32, #tpu.memory_space<vmem>>, vector<1x8x128xf32>
      %53 = vector.shape_cast %52 : vector<1x8x128xf32> to vector<8x128xf32>
      %54 = vector.shape_cast %51 : vector<8x128xf32> to vector<1x8x128xf32>
      tpu.vector_store %arg4[%c3_26, %c0_27, %c0_28], %54 {strides = array<i32>} : memref<4x8x128xf32, #tpu.memory_space<vmem>>, vector<1x8x128xf32>,
    } else {
    }
    return
  }
  func.func @transform_0(%arg0: i32, %arg1: i32, %arg2: memref<4xi32, #tpu.memory_space<smem>>) -> (i32, i32, i32) {
    %c0_i32 = arith.constant 0 : i32
    %c0_i32_0 = arith.constant 0 : i32
    return %arg0, %arg1, %c0_i32 : i32, i32, i32
  }
  func.func @transform_1(%arg0: i32, %arg1: i32, %arg2: memref<4xi32, #tpu.memory_space<smem>>) -> (i32, i32, i32) {
    %c0_i32 = arith.constant 0 : i32
    %c0_i32_0 = arith.constant 0 : i32
    return %arg0, %arg1, %c0_i32 : i32, i32, i32
  }
}

</mosaic_0001>

<llo_original>
// kernel: tpu_custom_call.1
$region0: #{tpu_custom_call.1}
  #allocation0 [shape = 'u32[]', space=smem, size = 0x4, offset = 0x4, fixed_abs, tag = 'smem constant byte address 0x4 - core index']
  #allocation1 [shape = 'u32[144,128]{1,0:T(1,128)}', space=vmem, size = 0x12000, scoped, tag = 'internal scratch']
  #allocation2 [shape = 's32[1]{0}', space=sflag, size = 0x4, scoped, tag = 'scoped memory for tpu_custom_call.1']
  #allocation3 [shape = 'u8[512]{0}', space=smem, size = 0x200, scoped, tag = 'prefetched SMEM operand 0']
  %s0 = inlined_call_operand.hbm [shape: s32[4], index: 0, kind: input, shape index: {}]
  %s1 = inlined_call_operand.hbm [shape: f32[4,8,128], index: 1, kind: input, shape index: {}]
  %s2 = inlined_call_operand.hbm [shape: f32[4,8,128], index: 2, kind: output, shape index: {}]
  %s3 = sld [smem:[#allocation0]]
  $region66: #{tpu_custom_call.1} parent=0
    _
  %s5 = ssub.s32 1, %s3
  %s6 = scalar_select 0, %s5, %s3
  %8 = dma.hbm_to_smem %s0, 16, [#allocation3], [#allocation2]
  %9 = dma.done [#allocation2], 16
  %10 = sfence
  $region1: #{tpu_custom_call.1} parent=0
    #allocation4 [shape = 'u8[16384]{0}', space=vmem, size = 0x4000, scoped, tag = 'input window, operand 1, single buffered']
    #allocation5 [shape = 's32[1]{0}', space=sflag, size = 0x4, scoped, tag = 'scoped memory for tpu_custom_call.1']
    #allocation6 [shape = 's32[1]{0}', space=sflag, size = 0x4, scoped, tag = 'scoped memory for tpu_custom_call.1']
    #allocation7 [shape = 'u8[16384]{0}', space=vmem, size = 0x4000, scoped, tag = 'output window, operand 0, single buffered']
    %11 = vsyncpa [#allocation5], 0
    %12 = vsyncpa [#allocation6], 0
    // Predicated region
    $region2: #{tpu_custom_call.1} parent=1 // pred_check
      _
    $region3: #{tpu_custom_call.1} parent=1 // pred_check_branch
      %14 = sbr.rel (0) target = $region5
    $region4: #{tpu_custom_call.1} parent=1 // pred_region
      %s16 = ssub.s32 512, 512
      %17 = vsyncadd [#allocation5], %s16
      %s18 = sshll.u32 [#allocation4], 4
      %s19 = int_to_ptr.vmem [resolvable:$true] %s18
      %24 = dma.hbm_to_vmem [thread:$0]  %s1, 512, %s19, [#allocation5], 128, 128, 8
    $region5: #{tpu_custom_call.1} parent=1 // pred_fallthru
      _
    // Predicated region
    $region6: #{tpu_custom_call.1} parent=1 // pred_check
      _
    $region7: #{tpu_custom_call.1} parent=1 // pred_check_branch
      %26 = sbr.rel (0) target = $region9
    $region8: #{tpu_custom_call.1} parent=1 // pred_region
      %27 = dma.done [#allocation5], 512
    $region9: #{tpu_custom_call.1} parent=1 // pred_fallthru
      _
    %s28 = smul.u32 0, 4
    %s29 = sld [smem:[#allocation3 + %s28]]
    %p30 = scmp.eq.s32.totalorder %s29, 0
    // Predicated region
    $region10: #{tpu_custom_call.1} parent=1 // pred_check
      %p31 = pneg %p30
    $region11: #{tpu_custom_call.1} parent=1 // pred_check_branch
      %33 = sbr.rel (%p31) target = $region13
    $region12: #{tpu_custom_call.1} parent=1 // pred_region
      %v34 = vld [vmem:[#allocation4] sm:$0xff]
      %35 = vst [vmem:[#allocation7] sm:$0xff] %v34
    $region13: #{tpu_custom_call.1} parent=1 // pred_fallthru
      _
    %p36 = scmp.eq.s32.totalorder %s29, 1
    // Predicated region
    $region14: #{tpu_custom_call.1} parent=1 // pred_check
      %p37 = pneg %p36
    $region15: #{tpu_custom_call.1} parent=1 // pred_check_branch
      %39 = sbr.rel (%p37) target = $region17
    $region16: #{tpu_custom_call.1} parent=1 // pred_region
      %v40 = vld [vmem:[#allocation4] sm:$0xff]
      %41 = vrot.lane.b32.xlu0 %v40, 1
      %v42 = vpop.permute.xlu0 %41
      %43 = vst [vmem:[#allocation7] sm:$0xff] %v42
    $region17: #{tpu_custom_call.1} parent=1 // pred_fallthru
      _
    %p44 = scmp.eq.s32.totalorder %s29, 2
    // Predicated region
    $region18: #{tpu_custom_call.1} parent=1 // pred_check
      %p45 = pneg %p44
    $region19: #{tpu_custom_call.1} parent=1 // pred_check_branch
      %47 = sbr.rel (%p45) target = $region21
    $region20: #{tpu_custom_call.1} parent=1 // pred_region
      %v48 = vld [vmem:[#allocation4] sm:$0xff]
      %49 = vrot.lane.b32.xlu0 %v48, 2
      %v50 = vpop.permute.xlu0 %49
      %51 = vst [vmem:[#allocation7] sm:$0xff] %v50
    $region21: #{tpu_custom_call.1} parent=1 // pred_fallthru
      _
    %s52 = sadd.s32 %s28, 1
    %s53 = sld [smem:[#allocation3 + %s52]]
    %p54 = scmp.eq.s32.totalorder %s53, 0
    // Predicated region
    $region22: #{tpu_custom_call.1} parent=1 // pred_check
      %p55 = pneg %p54
    $region23: #{tpu_custom_call.1} parent=1 // pred_check_branch
      %57 = sbr.rel (%p55) target = $region25
    $region24: #{tpu_custom_call.1} parent=1 // pred_region
      %s58 = scalar_lea.vmem [#allocation4], 8
      %v59 = vld [vmem:[%s58] sm:$0xff]
      %s60 = scalar_lea.vmem [#allocation7], 8
      %61 = vst [vmem:[%s60] sm:$0xff] %v59
    $region25: #{tpu_custom_call.1} parent=1 // pred_fallthru
      _
    %p62 = scmp.eq.s32.totalorder %s53, 1
    // Predicated region
    $region26: #{tpu_custom_call.1} parent=1 // pred_check
      %p63 = pneg %p62
    $region27: #{tpu_custom_call.1} parent=1 // pred_check_branch
      %65 = sbr.rel (%p63) target = $region29
    $region28: #{tpu_custom_call.1} parent=1 // pred_region
      %s66 = scalar_lea.vmem [#allocation4], 8
      %v67 = vld [vmem:[%s66] sm:$0xff]
      %68 = vrot.lane.b32.xlu0 %v67, 1
      %v69 = vpop.permute.xlu0 %68
      %s70 = scalar_lea.vmem [#allocation7], 8
      %71 = vst [vmem:[%s70] sm:$0xff] %v69
    $region29: #{tpu_custom_call.1} parent=1 // pred_fallthru
      _
    %p72 = scmp.eq.s32.totalorder %s53, 2
    // Predicated region
    $region30: #{tpu_custom_call.1} parent=1 // pred_check
      %p73 = pneg %p72
    $region31: #{tpu_custom_call.1} parent=1 // pred_check_branch
      %75 = sbr.rel (%p73) target = $region33
    $region32: #{tpu_custom_call.1} parent=1 // pred_region
      %s76 = scalar_lea.vmem [#allocation4], 8
      %v77 = vld [vmem:[%s76] sm:$0xff]
      %78 = vrot.lane.b32.xlu0 %v77, 2
      %v79 = vpop.permute.xlu0 %78
      %s80 = scalar_lea.vmem [#allocation7], 8
      %81 = vst [vmem:[%s80] sm:$0xff] %v79
    $region33: #{tpu_custom_call.1} parent=1 // pred_fallthru
      _
    %s82 = sadd.s32 %s28, 2
    %s83 = sld [smem:[#allocation3 + %s82]]
    %p84 = scmp.eq.s32.totalorder %s83, 0
    // Predicated region
    $region34: #{tpu_custom_call.1} parent=1 // pred_check
      %p85 = pneg %p84
    $region35: #{tpu_custom_call.1} parent=1 // pred_check_branch
      %87 = sbr.rel (%p85) target = $region37
    $region36: #{tpu_custom_call.1} parent=1 // pred_region
      %s88 = scalar_lea.vmem [#allocation4], 16
      %v89 = vld [vmem:[%s88] sm:$0xff]
      %s90 = scalar_lea.vmem [#allocation7], 16
      %91 = vst [vmem:[%s90] sm:$0xff] %v89
    $region37: #{tpu_custom_call.1} parent=1 // pred_fallthru
      _
    %p92 = scmp.eq.s32.totalorder %s83, 1
    // Predicated region
    $region38: #{tpu_custom_call.1} parent=1 // pred_check
      %p93 = pneg %p92
    $region39: #{tpu_custom_call.1} parent=1 // pred_check_branch
      %95 = sbr.rel (%p93) target = $region41
    $region40: #{tpu_custom_call.1} parent=1 // pred_region
      %s96 = scalar_lea.vmem [#allocation4], 16
      %v97 = vld [vmem:[%s96] sm:$0xff]
      %98 = vrot.lane.b32.xlu0 %v97, 1
      %v99 = vpop.permute.xlu0 %98
      %s100 = scalar_lea.vmem [#allocation7], 16
      %101 = vst [vmem:[%s100] sm:$0xff] %v99
    $region41: #{tpu_custom_call.1} parent=1 // pred_fallthru
      _
    %p102 = scmp.eq.s32.totalorder %s83, 2
    // Predicated region
    $region42: #{tpu_custom_call.1} parent=1 // pred_check
      %p103 = pneg %p102
    $region43: #{tpu_custom_call.1} parent=1 // pred_check_branch
      %105 = sbr.rel (%p103) target = $region45
    $region44: #{tpu_custom_call.1} parent=1 // pred_region
      %s106 = scalar_lea.vmem [#allocation4], 16
      %v107 = vld [vmem:[%s106] sm:$0xff]
      %108 = vrot.lane.b32.xlu0 %v107, 2
      %v109 = vpop.permute.xlu0 %108
      %s110 = scalar_lea.vmem [#allocation7], 16
      %111 = vst [vmem:[%s110] sm:$0xff] %v109
    $region45: #{tpu_custom_call.1} parent=1 // pred_fallthru
      _
    %s112 = sadd.s32 %s28, 3
    %s113 = sld [smem:[#allocation3 + %s112]]
    %p114 = scmp.eq.s32.totalorder %s113, 0
    // Predicated region
    $region46: #{tpu_custom_call.1} parent=1 // pred_check
      %p115 = pneg %p114
    $region47: #{tpu_custom_call.1} parent=1 // pred_check_branch
      %117 = sbr.rel (%p115) target = $region49
    $region48: #{tpu_custom_call.1} parent=1 // pred_region
      %s118 = scalar_lea.vmem [#allocation4], 24
      %v119 = vld [vmem:[%s118] sm:$0xff]
      %s120 = scalar_lea.vmem [#allocation7], 24
      %121 = vst [vmem:[%s120] sm:$0xff] %v119
    $region49: #{tpu_custom_call.1} parent=1 // pred_fallthru
      _
    %p122 = scmp.eq.s32.totalorder %s113, 1
    // Predicated region
    $region50: #{tpu_custom_call.1} parent=1 // pred_check
      %p123 = pneg %p122
    $region51: #{tpu_custom_call.1} parent=1 // pred_check_branch
      %125 = sbr.rel (%p123) target = $region53
    $region52: #{tpu_custom_call.1} parent=1 // pred_region
      %s126 = scalar_lea.vmem [#allocation4], 24
      %v127 = vld [vmem:[%s126] sm:$0xff]
      %128 = vrot.lane.b32.xlu0 %v127, 1
      %v129 = vpop.permute.xlu0 %128
      %s130 = scalar_lea.vmem [#allocation7], 24
      %131 = vst [vmem:[%s130] sm:$0xff] %v129
    $region53: #{tpu_custom_call.1} parent=1 // pred_fallthru
      _
    %p132 = scmp.eq.s32.totalorder %s113, 2
    // Predicated region
    $region54: #{tpu_custom_call.1} parent=1 // pred_check
      %p133 = pneg %p132
    $region55: #{tpu_custom_call.1} parent=1 // pred_check_branch
      %135 = sbr.rel (%p133) target = $region57
    $region56: #{tpu_custom_call.1} parent=1 // pred_region
      %s136 = scalar_lea.vmem [#allocation4], 24
      %v137 = vld [vmem:[%s136] sm:$0xff]
      %138 = vrot.lane.b32.xlu0 %v137, 2
      %v139 = vpop.permute.xlu0 %138
      %s140 = scalar_lea.vmem [#allocation7], 24
      %141 = vst [vmem:[%s140] sm:$0xff] %v139
    $region57: #{tpu_custom_call.1} parent=1 // pred_fallthru
      _
    // Predicated region
    $region58: #{tpu_custom_call.1} parent=1 // pred_check
      _
    $region59: #{tpu_custom_call.1} parent=1 // pred_check_branch
      %143 = sbr.rel (0) target = $region61
    $region60: #{tpu_custom_call.1} parent=1 // pred_region
      %s145 = ssub.s32 512, 512
      %146 = vsyncadd [#allocation6], %s145
      %s147 = sshll.u32 [#allocation7], 4
      %s148 = int_to_ptr.vmem [resolvable:$true] %s147
      %153 = dma.vmem_to_hbm [thread:$0]  %s148, 512, %s2, [#allocation6], 128, 128, 8
    $region61: #{tpu_custom_call.1} parent=1 // pred_fallthru
      _
    // Predicated region
    $region62: #{tpu_custom_call.1} parent=1 // pred_check
      _
    $region63: #{tpu_custom_call.1} parent=1 // pred_check_branch
      %155 = sbr.rel (0) target = $region65
    $region64: #{tpu_custom_call.1} parent=1 // pred_region
      %156 = dma.done [#allocation6], 512
    $region65: #{tpu_custom_call.1} parent=1 // pred_fallthru
      _
    %157 = vsyncpa [#allocation5], 1
    %158 = vsyncpa [#allocation6], 1

</llo_original>
